<compile_context>
chip_gen: v7x
topology: tpu7x:2x2x1
jax: 0.10.0
libtpu: 0.0.40
codegen_flags: <defaults>
</compile_context>

<pallas_src>
import math
import numpy as np
import jax
import jax.numpy as jnp
from jax import lax
from jax.experimental import pallas as pl
from jax.experimental.pallas import tpu as pltpu


# ----------------------------------------------------------------------------
# Pallas kernel: circular Conv1d (k=3, pad=1, no bias), im2col built in VMEM
# ----------------------------------------------------------------------------
def token_embed_kernel(xpad_ref, w_ref, o_ref):
    # xpad_ref : (BB, L+2, c_in)    input dtype (f32), circular halo rows at 0 and L+1
    # w_ref    : (3*c_in, d_model)  bf16 folded conv weight (resident across grid)
    # o_ref    : (BB, L, d_model)   out_dtype (bf16 by default)
    bb = o_ref.shape[0]
    L = o_ref.shape[1]
    w = w_ref[...]  # load once per grid step, reused across the batch loop

    def one_batch(i, carry):
        xp = xpad_ref[i]                                    # (L+2, c_in)
        # Row t of the im2col tile = channels of x[(t-1)%L] | x[t] | x[(t+1)%L],
        # i.e. halo rows t, t+1, t+2.  Static sublane slices + lane concat only.
        xcat = jnp.concatenate(
            [xp[0:L, :], xp[1:L + 1, :], xp[2:L + 2, :]], axis=1
        ).astype(w.dtype)                                   # (L, 3*c_in) bf16
        acc = jnp.dot(xcat, w, preferred_element_type=jnp.float32)  # one MXU matmul
        o_ref[i] = acc.astype(o_ref.dtype)
        return carry

    lax.fori_loop(0, bb, one_batch, 0, unroll=True if bb <= 8 else None)


def _choose_batch_block(B, L, c_in, d_model, in_bytes, out_bytes,
                        vmem_block_budget):
    """Largest batch-tile BB that divides B, keeps double-buffered input+output
    blocks under `vmem_block_budget`, and leaves >= 2 grid steps when possible
    (so both v7x TensorCores get work)."""
    per_b = 2 * (L + 2) * c_in * in_bytes + 2 * L * d_model * out_bytes
    cap = max(1, vmem_block_budget // max(per_b, 1))
    divisors = [d for d in range(1, B + 1) if B % d == 0]
    fitting = [d for d in divisors if d <= cap]
    bb = max(fitting) if fitting else 1
    if bb == B and B >= 2:
        smaller = [d for d in divisors if d <= B // 2]
        if smaller:
            bb = max(smaller)
    return bb


def prepare_token_embedding_weight(conv_weight, compute_dtype=jnp.bfloat16):
    """Weight re-layout ONCE at init (not per forward call).

    conv_weight: (d_model, c_in, 3) -- PyTorch Conv1d layout.
    Returns (3*c_in, d_model) in compute_dtype, tap-major along K to match the
    in-kernel im2col concatenation order [tap(t-1) | tap(t) | tap(t+1)].
    """
    d_model, c_in, ksize = conv_weight.shape
    w = jnp.transpose(conv_weight, (2, 1, 0)).reshape(ksize * c_in, d_model)
    return w.astype(compute_dtype)


def token_embedding_pallas(x, w_mat, *, out_dtype=jnp.bfloat16,
                           vmem_block_budget=12 * 1024 * 1024):
    """x: (B, L, c_in); w_mat: (3*c_in, d_model) prepared weight -> (B, L, d_model)."""
    B, L, c_in = x.shape
    K, d_model = w_mat.shape
    assert K == 3 * c_in

    # Circular halo only (no 3x im2col blow-up): xpad[:,0]=x[:,-1], xpad[:,L+1]=x[:,0].
    xpad = jnp.concatenate([x[:, -1:, :], x, x[:, :1, :]], axis=1)   # (B, L+2, c_in)

    in_bytes = x.dtype.itemsize
    out_bytes = jnp.dtype(out_dtype).itemsize
    BB = _choose_batch_block(B, L, c_in, d_model, in_bytes, out_bytes,
                             vmem_block_budget)
    grid = (B // BB,)

    cost = pl.CostEstimate(
        flops=2 * B * L * K * d_model,
        transcendentals=0,
        bytes_accessed=(B * (L + 2) * c_in * in_bytes
                        + K * d_model * w_mat.dtype.itemsize
                        + B * L * d_model * out_bytes),
    )

    return pl.pallas_call(
        token_embed_kernel,
        out_shape=jax.ShapeDtypeStruct((B, L, d_model), out_dtype),
        grid_spec=pltpu.PrefetchScalarGridSpec(
            num_scalar_prefetch=0,
            grid=grid,
            in_specs=[
                pl.BlockSpec((BB, L + 2, c_in), lambda b: (b, 0, 0)),
                pl.BlockSpec((K, d_model), lambda b: (0, 0)),   # weight resident
            ],
            out_specs=pl.BlockSpec((BB, L, d_model), lambda b: (b, 0, 0)),
        ),
        compiler_params=pltpu.CompilerParams(
            dimension_semantics=("parallel",),
            vmem_limit_bytes=32 * 1024 * 1024,   # well under v7x's 64 MiB VMEM
        ),
        cost_estimate=cost,
    )(xpad, w_mat)


# ----------------------------------------------------------------------------
# Module wrapper
# ----------------------------------------------------------------------------
def make_conv_weight(key, c_in, d_model, kernel_size=3):
    """Deterministic Kaiming-normal init (fan_in, leaky_relu) matching PyTorch."""
    fan_in = c_in * kernel_size
    neg_slope = 0.01
    gain = math.sqrt(2.0 / (1.0 + neg_slope ** 2))
    std = gain / math.sqrt(fan_in)
    return std * jax.random.normal(key, (d_model, c_in, kernel_size), jnp.float32)


def data_embedding_wo_pos_temp(x, x_mark, w_mat, out_dtype=jnp.bfloat16):
    """Forward of DataEmbedding_wo_pos_temp.
    x: (B, L, c_in), x_mark: (B, L, n_time) (unused by this module's forward),
    w_mat: prepared (3*c_in, d_model) weight. Returns (B, L, d_model) in out_dtype
    (bf16 by default: MXU products are bf16 anyway, halves the dominant write stream)."""
    del x_mark  # not used by this module's forward
    y = token_embedding_pallas(x, w_mat, out_dtype=out_dtype)
    # TODO(synk): nn.Dropout(p=0.1) is identity in eval mode; training-mode masking omitted.
    return y


# ----------------------------------------------------------------------------
# References (plain JAX) for validation
# ----------------------------------------------------------------------------
def reference_forward_f32(x, conv_weight):
    """Full-precision reference of the PyTorch circular Conv1d semantics."""
    xm1 = jnp.roll(x, 1, axis=1)
    xp1 = jnp.roll(x, -1, axis=1)
    w = jnp.transpose(conv_weight, (2, 1, 0))                # (3, c_in, d_model)
    return (jnp.einsum('blc,cd->bld', xm1, w[0])
            + jnp.einsum('blc,cd->bld', x, w[1])
            + jnp.einsum('blc,cd->bld', xp1, w[2]))


def reference_forward_bf16ops(x, w_mat):
    """Same bf16 operand rounding as the kernel, f32 accumulation."""
    xi = jnp.concatenate(
        [jnp.roll(x, 1, axis=1), x, jnp.roll(x, -1, axis=1)], axis=-1
    ).astype(jnp.bfloat16).astype(jnp.float32)
    return jnp.einsum('blk,kd->bld', xi, w_mat.astype(jnp.float32))


if __name__ == "__main__":
    # --- primary small config (matches the module's expected input layout) ---
    B, L, c_in, d_model = 2, 8, 4, 32
    key = jax.random.PRNGKey(0)
    kx, km, kw = jax.random.split(key, 3)

    x = jax.random.normal(kx, (B, L, c_in), jnp.float32)
    x_mark = jax.random.normal(km, (B, L, 4), jnp.float32)   # freq='h' -> 4 time features
    conv_weight = make_conv_weight(kw, c_in, d_model)
    w_mat = prepare_token_embedding_weight(conv_weight)      # one-time init-side re-layout

    out = data_embedding_wo_pos_temp(x, x_mark, w_mat)
    out = jax.block_until_ready(out)
    assert out.shape == (B, L, d_model)

    out_f32 = np.asarray(out.astype(jnp.float32))
    np.testing.assert_allclose(out_f32, np.asarray(reference_forward_bf16ops(x, w_mat)),
                               rtol=2e-2, atol=2e-2)
    np.testing.assert_allclose(out_f32, np.asarray(reference_forward_f32(x, conv_weight)),
                               rtol=6e-2, atol=6e-2)

    # --- second config exercising BB > 1 (batch-fused block + in-kernel loop) ---
    B2, L2, c2, d2 = 4, 16, 7, 32
    k2x, k2w = jax.random.split(jax.random.PRNGKey(1))
    x2 = jax.random.normal(k2x, (B2, L2, c2), jnp.float32)
    conv_w2 = make_conv_weight(k2w, c2, d2)
    w2_mat = prepare_token_embedding_weight(conv_w2)
    out2 = jax.block_until_ready(data_embedding_wo_pos_temp(x2, None, w2_mat))
    assert out2.shape == (B2, L2, d2)
    np.testing.assert_allclose(np.asarray(out2.astype(jnp.float32)),
                               np.asarray(reference_forward_bf16ops(x2, w2_mat)),
                               rtol=2e-2, atol=2e-2)
    np.testing.assert_allclose(np.asarray(out2.astype(jnp.float32)),
                               np.asarray(reference_forward_f32(x2, conv_w2)),
                               rtol=6e-2, atol=6e-2)

    print("KERNEL_OK")
</pallas_src>

<mosaic_0001>
module attributes {stable_mosaic.version = 11 : i64} {
  func.func @token_embed_kernel(%arg0: i32, %arg1: memref<1x10x4xf32, #tpu.memory_space<vmem>>, %arg2: memref<12x32xbf16, #tpu.memory_space<vmem>>, %arg3: memref<1x8x32xbf16, #tpu.memory_space<vmem>>) attributes {dimension_semantics = [#tpu.dimension_semantics<parallel>], iteration_bounds = array<i64: 2>, scalar_prefetch = 0 : i64, scratch_operands = 0 : i64, tpu.core_type = #tpu.core_type<tc>, window_params = [{transform_indices = @transform_0, window_bounds = array<i64: 1, 10, 4>}, {pipeline_mode = #tpu.pipeline_mode<synchronous>, transform_indices = @transform_1, window_bounds = array<i64: 12, 32>}, {transform_indices = @transform_2, window_bounds = array<i64: 1, 8, 32>}]} {
    %c0 = arith.constant 0 : index
    %c0_0 = arith.constant 0 : index
    %0 = vector.load %arg2[%c0, %c0_0] : memref<12x32xbf16, #tpu.memory_space<vmem>>, vector<12x32xbf16>
    %c0_i32 = arith.constant 0 : i32
    %1 = arith.index_cast %c0_i32 : i32 to index
    %c0_1 = arith.constant 0 : index
    %c0_2 = arith.constant 0 : index
    %2 = vector.load %arg1[%1, %c0_1, %c0_2] : memref<1x10x4xf32, #tpu.memory_space<vmem>>, vector<1x10x4xf32>
    %3 = vector.shape_cast %2 : vector<1x10x4xf32> to vector<10x4xf32>
    %4 = vector.extract_strided_slice %3 {offsets = [0, 0], sizes = [8, 4], strides = [1, 1]} : vector<10x4xf32> to vector<8x4xf32>
    %5 = vector.extract_strided_slice %3 {offsets = [1, 0], sizes = [8, 4], strides = [1, 1]} : vector<10x4xf32> to vector<8x4xf32>
    %6 = vector.extract_strided_slice %3 {offsets = [2, 0], sizes = [8, 4], strides = [1, 1]} : vector<10x4xf32> to vector<8x4xf32>
    %7 = tpu.concatenate %4, %5, %6 in 1 : vector<8x4xf32>, vector<8x4xf32>, vector<8x4xf32> -> vector<8x12xf32>
    %8 = arith.truncf %7 : vector<8x12xf32> to vector<8x12xbf16>
    %cst = arith.constant dense<0.000000e+00> : vector<8x32xf32>
    %9 = tpu.matmul %8, %0, %cst {dimension_numbers = #tpu.dot_dimension_numbers<[1], [0], [0], [1], [0, 0, 1, 1], [], []>} : vector<8x12xbf16>, vector<12x32xbf16>, vector<8x32xf32> -> vector<8x32xf32>
    %10 = arith.truncf %9 : vector<8x32xf32> to vector<8x32xbf16>
    %11 = arith.index_cast %c0_i32 : i32 to index
    %c0_3 = arith.constant 0 : index
    %c0_4 = arith.constant 0 : index
    %12 = vector.load %arg3[%11, %c0_3, %c0_4] : memref<1x8x32xbf16, #tpu.memory_space<vmem>>, vector<1x8x32xbf16>
    %13 = vector.shape_cast %12 : vector<1x8x32xbf16> to vector<8x32xbf16>
    %14 = vector.shape_cast %10 : vector<8x32xbf16> to vector<1x8x32xbf16>
    tpu.vector_store %arg3[%11, %c0_3, %c0_4], %14 {strides = array<i32>} : memref<1x8x32xbf16, #tpu.memory_space<vmem>>, vector<1x8x32xbf16>,
    %c1_i32 = arith.constant 1 : i32
    return
  }
  func.func @transform_0(%arg0: i32) -> (i32, i32, i32) {
    %c0_i32 = arith.constant 0 : i32
    %c0_i32_0 = arith.constant 0 : i32
    %c0_i32_1 = arith.constant 0 : i32
    return %arg0, %c0_i32, %c0_i32_0 : i32, i32, i32
  }
  func.func @transform_1(%arg0: i32) -> (i32, i32) {
    %c0_i32 = arith.constant 0 : i32
    %c0_i32_0 = arith.constant 0 : i32
    %c0_i32_1 = arith.constant 0 : i32
    return %c0_i32, %c0_i32_0 : i32, i32
  }
  func.func @transform_2(%arg0: i32) -> (i32, i32, i32) {
    %c0_i32 = arith.constant 0 : i32
    %c0_i32_0 = arith.constant 0 : i32
    %c0_i32_1 = arith.constant 0 : i32
    return %arg0, %c0_i32, %c0_i32_0 : i32, i32, i32
  }
}

</mosaic_0001>

<llo_original>
// kernel: tpu_custom_call.1
$region0: #{tpu_custom_call.1}
  #allocation0 [shape = 'u32[]', space=smem, size = 0x4, offset = 0x4, fixed_abs, tag = 'smem constant byte address 0x4 - core index']
  #allocation1 [shape = 'u32[144,128]{1,0:T(1,128)}', space=vmem, size = 0x12000, scoped, tag = 'internal scratch']
  %s0 = inlined_call_operand.vmem [shape: f32[2,10,4], index: 0, kind: input, shape index: {}]
  %s1 = inlined_call_operand.vmem [shape: bf16[12,32], index: 1, kind: input, shape index: {}]
  %s2 = inlined_call_operand.hbm [shape: bf16[2,8,32], index: 2, kind: output, shape index: {}]
  %s3 = sld [smem:[#allocation0]]
  $region41: #{tpu_custom_call.1} parent=0
    _
  %s5 = ssub.s32 1, %s3
  %s6 = scalar_select 0, %s5, %s3
  $region1: #{tpu_custom_call.1} parent=0
    #allocation2 [shape = 'u8[4096]{0}', space=vmem, size = 0x1000, scoped, tag = 'output window, operand 0']
    #allocation3 [shape = 's32[2]{0}', space=sflag, size = 0x8, scoped, tag = 'scoped memory for tpu_custom_call.1']
    %7 = vsyncpa [#allocation3], 0
    %s8 = scalar_lea.sflag [#allocation3], 1
    %9 = vsyncpa %s8, 0
    loop: start=0, step=1, limit=4
    $region2: #{tpu_custom_call.1} parent=1 // loop_pre_header
      _
    $region3: #{tpu_custom_call.1} parent=1 // loop_header
      %s11 = sphi 0, %s15
      %p12 = scmp.ge.s32.totalorder %s11, 4
      %s21 = sphi 0, %s23
      %s24 = sphi 0, %s21
      %s25 = sphi 0, %s24
      %s41 = sphi 0, %s25
      %s45 = sphi 0, %s45
      %s47 = sphi 0, %s45
      %s48 = sphi 0, %s47
      %s62 = sphi 0, %s48
      %s68 = sphi 0, %s70
      %s71 = sphi 0, %s68
      %s72 = sphi 0, %s71
      %s88 = sphi 0, %s72
    $region4: #{tpu_custom_call.1} parent=1 // loop_header_branch
      %14 = sbr.rel (%p12) target = $region8
    $region5: #{tpu_custom_call.1} parent=1 // loop_body
      %s16 = ssub.s32 %s11, 1
      %s17 = ssub.s32 %s11, 2
      %s18 = sadd.s32 %s11, 1
      %s19 = ssub.s32 %s11, %s18
      %p20 = scmp.eq.s32.totalorder %s19, 0
      %s22 = sadd.s32 %s21, 1
      %s23 = scalar_select %p20, %s21, %s22
      %p26 = pneg %p20
      %p27 = scmp.eq.s32.totalorder %s11, 1
      %p28 = por %p26, %p27
      %p29 = scmp.ne.s32.totalorder %s21, %s24
      %p30 = scmp.eq.s32.totalorder %s11, 0
      %p31 = por %p29, %p30
      %p32 = scmp.ne.s32.totalorder %s21, %s24
      %p33 = scmp.eq.s32.totalorder %s16, 1
      %p34 = por %p32, %p33
      %p35 = scmp.ne.s32.totalorder %s24, %s25
      %p36 = scmp.eq.s32.totalorder %s16, 0
      %p37 = por %p35, %p36
      %p38 = scmp.ne.s32.totalorder %s24, %s25
      %p39 = scmp.eq.s32.totalorder %s17, 1
      %p40 = por %p38, %p39
      %p42 = scmp.ne.s32.totalorder %s25, %s41
      %p43 = scmp.eq.s32.totalorder %s17, 0
      %p44 = por %p42, %p43
      %s46 = sadd.s32 %s45, 1
      %p49 = scmp.eq.s32.totalorder %s11, 1
      %p50 = scmp.ne.s32.totalorder %s45, %s47
      %p51 = scmp.eq.s32.totalorder %s11, 0
      %p52 = por %p50, %p51
      %p53 = scmp.ne.s32.totalorder %s45, %s47
      %p54 = scmp.eq.s32.totalorder %s16, 1
      %p55 = por %p53, %p54
      %p56 = scmp.ne.s32.totalorder %s47, %s48
      %p57 = scmp.eq.s32.totalorder %s16, 0
      %p58 = por %p56, %p57
      %p59 = scmp.ne.s32.totalorder %s47, %s48
      %p60 = scmp.eq.s32.totalorder %s17, 1
      %p61 = por %p59, %p60
      %p63 = scmp.ne.s32.totalorder %s48, %s62
      %p64 = scmp.eq.s32.totalorder %s17, 0
      %p65 = por %p63, %p64
      %s66 = ssub.s32 %s11, %s18
      %p67 = scmp.eq.s32.totalorder %s66, 0
      %s69 = sadd.s32 %s68, 1
      %s70 = scalar_select %p67, %s68, %s69
      %p73 = pneg %p67
      %p74 = scmp.eq.s32.totalorder %s11, 1
      %p75 = por %p73, %p74
      %p76 = scmp.ne.s32.totalorder %s68, %s71
      %p77 = scmp.eq.s32.totalorder %s11, 0
      %p78 = por %p76, %p77
      %p79 = scmp.ne.s32.totalorder %s68, %s71
      %p80 = scmp.eq.s32.totalorder %s16, 1
      %p81 = por %p79, %p80
      %p82 = scmp.ne.s32.totalorder %s71, %s72
      %p83 = scmp.eq.s32.totalorder %s16, 0
      %p84 = por %p82, %p83
      %p85 = scmp.ne.s32.totalorder %s71, %s72
      %p86 = scmp.eq.s32.totalorder %s17, 1
      %p87 = por %p85, %p86
      %p89 = scmp.ne.s32.totalorder %s72, %s88
      %p90 = scmp.eq.s32.totalorder %s17, 0
      %p91 = por %p89, %p90
      %p92 = scmp.le.s32.totalorder 1, %s11
      %p93 = scmp.lt.s32.totalorder %s11, 3
      %p94 = pnand %p92, %p93
      %p95 = pneg %p94
      // Predicated region
      $region9: #{tpu_custom_call.1} parent=5 // pred_check
        _
      $region10: #{tpu_custom_call.1} parent=5 // pred_check_branch
        %97 = sbr.rel (%p94) target = $region12
      $region11: #{tpu_custom_call.1} parent=5 // pred_region
        %s98 = ssub.s32 %s11, 1
        // Predicated region
        $region13: #{tpu_custom_call.1} parent=11 // pred_check
          %p99 = pneg %p58
        $region14: #{tpu_custom_call.1} parent=11 // pred_check_branch
          %101 = sbr.rel (%p99) target = $region16
        $region15: #{tpu_custom_call.1} parent=11 // pred_region
          _
        $region16: #{tpu_custom_call.1} parent=11 // pred_fallthru
          _
      $region12: #{tpu_custom_call.1} parent=5 // pred_fallthru
        _
      %p102 = scmp.lt.s32.totalorder %s11, 2
      // Predicated region
      $region17: #{tpu_custom_call.1} parent=5 // pred_check
        %p103 = pneg %p102
      $region18: #{tpu_custom_call.1} parent=5 // pred_check_branch
        %105 = sbr.rel (%p103) target = $region20
      $region19: #{tpu_custom_call.1} parent=5 // pred_region
        // Predicated region
        $region21: #{tpu_custom_call.1} parent=19 // pred_check
          %p106 = pneg %p31
        $region22: #{tpu_custom_call.1} parent=19 // pred_check_branch
          %108 = sbr.rel (%p106) target = $region24
        $region23: #{tpu_custom_call.1} parent=19 // pred_region
          %p109 = scmp.lt.s32.totalorder %s11, 1
          %s110 = scalar_select %p109, %s11, 1
          %s111 = smul.addr %s110, 2
          %s112 = smul.addr %s111, 8
          %s113 = scalar_lea.vmem %s0, %s112
        $region24: #{tpu_custom_call.1} parent=19 // pred_fallthru
          _
      $region20: #{tpu_custom_call.1} parent=5 // pred_fallthru
        _
      %p114 = scmp.le.s32.totalorder 1, %s11
      %p115 = scmp.lt.s32.totalorder %s11, 3
      %p116 = pnand %p114, %p115
      %p117 = pneg %p116
      // Predicated region
      $region25: #{tpu_custom_call.1} parent=5 // pred_check
        _
      $region26: #{tpu_custom_call.1} parent=5 // pred_check_branch
        %119 = sbr.rel (%p116) target = $region28
      $region27: #{tpu_custom_call.1} parent=5 // pred_region
        %s120 = ssub.s32 %s11, 1
        %p121 = scmp.lt.s32.totalorder %s16, 1
        %s122 = scalar_select %p121, %s16, 1
        %s123 = smul.addr %s122, 2
        %s124 = smul.addr %s123, 8
        %s125 = scalar_lea.vmem %s0, %s124
        %p126 = pneg %p37
        %p127 = pneg %p34
        %p128 = pneg %p58
        %p129 = pneg %p55
        %p130 = pneg %p84
        %p131 = pneg %p81
        %s132 = sand.u32 %s71, 1
        %s133 = scalar_lea.sflag [#allocation3], %s132
        %s134 = sand.u32 %s71, 1
        %s135 = smul.addr %s134, 4
        %s136 = scalar_lea.vmem [#allocation2], %s135
        %p137 = scmp.lt.s32.totalorder %s16, 1
        %s138 = scalar_select %p137, %s16, 1
        %s139 = smul.addr %s138, 2
        %s140 = smul.addr %s139, 8
        %s141 = scalar_lea.vmem %s0, %s140
        %v143 = vld [vmem:[%s1] sm:$0xf]
        %v144 = vld [vmem:[%s1 + $0x4] sm:$0x3]
        %v145 = vld [vmem:[%s141] sm:$0xff]
        %v146 = vld [vmem:[%s141 + $0x8] sm:$0x3]
        %vm149 = vcmask 1046528
        %v150 = vrot.slane %v145, 1
        %v151 = vrot.slane %v146, 1
        %v152 = vsel %vm149, %v150, %v151
        %153 = vrot.lane.b32.xlu0 %v152, 4
        %v154 = vpop.permute.xlu0 %153
        %vm156 = vcmask 1045504
        %v157 = vrot.slane %v145, 2
        %v158 = vrot.slane %v146, 2
        %v159 = vsel %vm156, %v157, %v158
        %160 = vrot.lane.b32.xlu0 %v159, 8
        %v161 = vpop.permute.xlu0 %160
        %vm163 = vcmask 31744
        %v164 = vsel %vm163, %v145, %v154
        %vm165 = vcmask 64512
        %v166 = vsel %vm165, %v164, %v161
        %v167 = vpack.c.bf16 %v166, %v166
        %v170 = vunpack.c.l.b16 %v143
        %v171 = vunpack.c.l.b16 %v144
        %v172 = vpack.c.b16 %v171, %v170
        %vm173 = vcmask 97280
        %v175 = vsel %vm173, %v167, 0
        %v178 = vsel %vm156, %v172, 0
        %180 = vmatprep.subr.bf16.mxu0 0
        %181 = vmatpush1.bf16.msra.mxu0 %v178
        %182 = vmatprep.subr.bf16.mxu0 0
        %183 = vmatpush1.bf16.msra.mxu0 0
        %184 = vmatprep.subr.bf16.mxu0 0
        %185 = vmatpush1.bf16.msra.mxu0 0
        %186 = vmatprep.subr.bf16.mxu0 0
        %187 = vmatpush1.bf16.msra.mxu0 0
        %188 = vmatprep.subr.bf16.mxu0 0
        %189 = vmatpush1.bf16.msra.mxu0 0
        %190 = vmatprep.subr.bf16.mxu0 0
        %191 = vmatpush1.bf16.msra.mxu0 0
        %192 = vmatprep.subr.bf16.mxu0 0
        %193 = vmatpush1.bf16.msra.mxu0 0
        %194 = vmatprep.subr.bf16.mxu0 0
        %195 = vmatpush1.bf16.msra.mxu0 0
        %196 = vmatprep.subr.bf16.mxu0 0
        %197 = vmatpush1.bf16.msra.mxu0 0
        %198 = vmatprep.subr.bf16.mxu0 0
        %199 = vmatpush1.bf16.msra.mxu0 0
        %200 = vmatprep.subr.bf16.mxu0 0
        %201 = vmatpush1.bf16.msra.mxu0 0
        %202 = vmatprep.subr.bf16.mxu0 0
        %203 = vmatpush1.bf16.msra.mxu0 0
        %204 = vmatprep.subr.bf16.mxu0 0
        %205 = vmatpush1.bf16.msra.mxu0 0
        %206 = vmatprep.subr.bf16.mxu0 0
        %207 = vmatpush1.bf16.msra.mxu0 0
        %208 = vmatprep.subr.bf16.mxu0 0
        %209 = vmatpush1.bf16.msra.mxu0 0
        %210 = vmatprep.subr.bf16.mxu0 0
        %211 = vmatpush1.bf16.msra.mxu0 0
        %212 = vmatprep.mubr.bf16.mxu0 0
        %213 = vmatmul.mubr.bf16.gmra.mrb[0].mxu0 %v175
        %v214 = vpop.f32.mrb[0].mxu0
        %v215 = vadd.f32 0.0, %v214
        %v216 = vpop.f32.mrb[0].mxu0
        %v217 = vpop.f32.mrb[0].mxu0
        %v218 = vpop.f32.mrb[0].mxu0
        %219 = vdwg.mxu0
        %v220 = vpack.c.bf16 %v215, %v215
        %vm221 = vcmask 257024
        %222 = vst.msk [vmem:[%s136] sm:$0xf] %vm221, %v220
        %s223 = sand.u32 %s71, 1
        %s224 = scalar_lea.sflag [#allocation3], %s223
        %s225 = sand.u32 %s71, 1
        %s226 = smul.addr %s225, 4
        %s227 = scalar_lea.vmem [#allocation2], %s226
        // Predicated region
        $region29: #{tpu_custom_call.1} parent=27 // pred_check
          %p228 = pneg %p81
        $region30: #{tpu_custom_call.1} parent=27 // pred_check_branch
          %230 = sbr.rel (%p228) target = $region32
        $region31: #{tpu_custom_call.1} parent=27 // pred_region
          %s232 = ssub.s32 64, 64
          %233 = vsyncadd %s224, %s232
          %s234 = smul.addr %s16, 64
          %s235 = scalar_lea.hbm %s2, %s234
          %s237 = sshll.u32 %s227, 4
          %s238 = int_to_ptr.vmem [resolvable:$true] %s237
          %240 = dma.vmem_to_hbm [thread:$0]  %s238, 64, %s235, %s224
        $region32: #{tpu_custom_call.1} parent=27 // pred_fallthru
          _
      $region28: #{tpu_custom_call.1} parent=5 // pred_fallthru
        _
      %p241 = scmp.le.s32.totalorder 2, %s11
      // Predicated region
      $region33: #{tpu_custom_call.1} parent=5 // pred_check
        %p242 = pneg %p241
      $region34: #{tpu_custom_call.1} parent=5 // pred_check_branch
        %244 = sbr.rel (%p242) target = $region36
      $region35: #{tpu_custom_call.1} parent=5 // pred_region
        %s245 = ssub.s32 %s11, 2
        // Predicated region
        $region37: #{tpu_custom_call.1} parent=35 // pred_check
          %p246 = pneg %p87
        $region38: #{tpu_custom_call.1} parent=35 // pred_check_branch
          %248 = sbr.rel (%p246) target = $region40
        $region39: #{tpu_custom_call.1} parent=35 // pred_region
          %s249 = sand.u32 %s72, 1
          %s250 = scalar_lea.sflag [#allocation3], %s249
          %s251 = sand.u32 %s72, 1
          %s252 = smul.addr %s251, 4
          %s253 = scalar_lea.vmem [#allocation2], %s252
          %254 = dma.done %s250, 64
        $region40: #{tpu_custom_call.1} parent=35 // pred_fallthru
          _
      $region36: #{tpu_custom_call.1} parent=5 // pred_fallthru
        _
    $region6: #{tpu_custom_call.1} parent=1 // loop_footer
      %s15 = sadd.s32 1, %s11
    $region7: #{tpu_custom_call.1} parent=1 // loop_footer_branch
      %10 = sbr.rel target = $region3
    $region8: #{tpu_custom_call.1} parent=1 // loop_exit
      _
    %255 = vsyncpa [#allocation3], 1
    %s256 = scalar_lea.sflag [#allocation3], 1
    %257 = vsyncpa %s256, 1

</llo_original>
